<compile_context>
chip_gen: v6e
topology: v6e:2x2x1
jax: 0.10.0
libtpu: 0.0.40
codegen_flags: <defaults>
</compile_context>

<pallas_src>
import jax
import jax.numpy as jnp
from jax.experimental import pallas as pl
from jax.experimental.pallas import tpu as pltpu

_KS = 4  # conv kernel size == stride


def _pixel_change_kernel(x_ref, w_ref, b_ref, q_ref, qmax_ref, qarg_ref):
    # x_ref : (TM, K)      patches, lane-dense on K
    # w_ref : (Co_pad, K)  rows [0..A-1] = conv_a, row A = conv_v, rest = zero pad
    # b_ref : (Co_pad, 1)
    # q_ref : (A, TM), qmax_ref/qarg_ref : (1, TM)   -- lane-dense on TM
    n_act = q_ref.shape[0]

    # One MXU matmul for both heads, channel-major output (Co_pad, TM).
    z = jax.lax.dot_general(
        w_ref[...], x_ref[...], (((1,), (1,)), ((), ())),
        preferred_element_type=jnp.float32,
    ) + b_ref[...]
    z = jnp.maximum(z, 0.0)                           # fused ReLU on both heads

    a = z[:n_act, :]                                  # (A, TM)  relu(conv_a)
    v = z[n_act:n_act + 1, :]                         # (1, TM)  relu(conv_v)
    # (padded zero rows beyond n_act+1 are statically sliced away here)

    a_mean = jnp.mean(a, axis=0, keepdims=True)       # channel mean (sublane reduce)
    q = v + a - a_mean                                # dueling combine, (A, TM)
    q_ref[...] = q

    qmax = jnp.max(q, axis=0, keepdims=True)          # (1, TM)
    qmax_ref[...] = qmax

    # First-occurrence argmax over channels (matches jnp.argmax / torch.max).
    ch = jax.lax.broadcasted_iota(jnp.int32, q.shape, 0)
    qarg_ref[...] = jnp.min(jnp.where(q == qmax, ch, n_act),
                            axis=0, keepdims=True)


def pixel_change_forward(lstm_output, w_v, b_v, w_a, b_a):
    """lstm_output: (B, 64, H, W) f32 NCHW.
    w_v: (1, 64, 4, 4), b_v: (1,), w_a: (A, 64, 4, 4), b_a: (A,).
    Returns (pc_q (B, A, H/4, W/4), (pc_q_max (B, H/4, W/4), pc_q_argmax (B, H/4, W/4)))."""
    B, C, H, W = lstm_output.shape
    A = w_a.shape[0]
    Ho, Wo = H // _KS, W // _KS
    M, K = B * Ho * Wo, C * _KS * _KS

    # stride == kernel, padding = 0: non-overlapping 4x4 patches in (C, kh, kw)
    # order -- exactly how the PyTorch conv weight flattens.
    patches = (
        lstm_output.reshape(B, C, Ho, _KS, Wo, _KS)
        .transpose(0, 2, 4, 1, 3, 5)                  # (B, Ho, Wo, C, kh, kw)
        .reshape(M, K)
        .astype(jnp.float32)
    )

    # Fold the Co=1 value head into the advantage matmul, then pad Co to a
    # multiple of 8 (zero weights/biases; the kernel slices them off before
    # any reduction, so padding cannot skew mean/max/argmax).
    w_cat = jnp.concatenate(
        [w_a.reshape(A, K), w_v.reshape(1, K)], axis=0).astype(jnp.float32)
    b_cat = jnp.concatenate(
        [b_a.reshape(A), b_v.reshape(1)], axis=0).astype(jnp.float32)
    co = A + 1
    co_pad = ((co + 7) // 8) * 8
    if co_pad != co:
        w_cat = jnp.concatenate(
            [w_cat, jnp.zeros((co_pad - co, K), jnp.float32)], axis=0)
        b_cat = jnp.concatenate(
            [b_cat, jnp.zeros((co_pad - co,), jnp.float32)], axis=0)
    b_cat = b_cat.reshape(co_pad, 1)

    # M-grid: single full block at small sizes (grid=(1,) -> no per-step
    # overhead); 1024-row tiles at production M (double-buffered f32 patch
    # tiles stay well under v7x's 64 MiB VMEM, both TensorCores get work).
    tm = M if M <= 2048 else 1024
    grid_m = pl.cdiv(M, tm)

    q_cm, qmax_cm, qarg_cm = pl.pallas_call(
        _pixel_change_kernel,
        grid=(grid_m,),
        out_shape=(
            jax.ShapeDtypeStruct((A, M), jnp.float32),
            jax.ShapeDtypeStruct((1, M), jnp.float32),
            jax.ShapeDtypeStruct((1, M), jnp.int32),
        ),
        in_specs=[
            pl.BlockSpec((tm, K), lambda i: (i, 0)),       # patch tile per step
            pl.BlockSpec((co_pad, K), lambda i: (0, 0)),   # weights: VMEM-resident
            pl.BlockSpec((co_pad, 1), lambda i: (0, 0)),   # bias: VMEM-resident
        ],
        out_specs=(
            pl.BlockSpec((A, tm), lambda i: (0, i)),       # lane-dense q
            pl.BlockSpec((1, tm), lambda i: (0, i)),       # lane-dense max
            pl.BlockSpec((1, tm), lambda i: (0, i)),       # lane-dense argmax
        ),
        compiler_params=pltpu.CompilerParams(
            dimension_semantics=("parallel",)),
    )(patches, w_cat, b_cat)

    # Back to NCHW layout (pure layout plumbing in the wrapper).
    pc_q = q_cm.reshape(A, B, Ho, Wo).transpose(1, 0, 2, 3)
    pc_q_max = qmax_cm.reshape(B, Ho, Wo)
    pc_q_argmax = qarg_cm.reshape(B, Ho, Wo)
    # torch.max(dim=1) returns (values, indices); we return both.
    return pc_q, (pc_q_max, pc_q_argmax)


if __name__ == "__main__":
    # Small deterministic problem: B=2, 64 channels, 16x16 map -> 4x4 outputs.
    B, C, H, W = 2, 64, 16, 16
    A = 16  # stand-in for len(actions.FUNCTIONS) in the real model

    key = jax.random.PRNGKey(0)
    k_x, k_wv, k_bv, k_wa, k_ba = jax.random.split(key, 5)
    lstm_output = jax.random.normal(k_x, (B, C, H, W), dtype=jnp.float32)
    w_v = jax.random.normal(k_wv, (1, C, _KS, _KS), dtype=jnp.float32) * 0.05
    b_v = jax.random.normal(k_bv, (1,), dtype=jnp.float32) * 0.05
    w_a = jax.random.normal(k_wa, (A, C, _KS, _KS), dtype=jnp.float32) * 0.05
    b_a = jax.random.normal(k_ba, (A,), dtype=jnp.float32) * 0.05

    pc_q, (pc_q_max, pc_q_argmax) = pixel_change_forward(
        lstm_output, w_v, b_v, w_a, b_a)
    jax.block_until_ready((pc_q, pc_q_max, pc_q_argmax))

    # Pure-JAX/XLA reference (full-precision conv).
    dn = ("NCHW", "OIHW", "NCHW")
    hp = jax.lax.Precision.HIGHEST
    cv = jax.lax.conv_general_dilated(lstm_output, w_v, (_KS, _KS), "VALID",
                                      dimension_numbers=dn, precision=hp)
    ca = jax.lax.conv_general_dilated(lstm_output, w_a, (_KS, _KS), "VALID",
                                      dimension_numbers=dn, precision=hp)
    cv = jnp.maximum(cv + b_v.reshape(1, 1, 1, 1), 0.0)
    ca = jnp.maximum(ca + b_a.reshape(1, A, 1, 1), 0.0)
    q_ref = cv + ca - jnp.mean(ca, axis=1, keepdims=True)
    qmax_ref = jnp.max(q_ref, axis=1)

    Ho, Wo = H // _KS, W // _KS
    assert pc_q.shape == (B, A, Ho, Wo)
    assert pc_q_max.shape == (B, Ho, Wo)
    assert pc_q_argmax.shape == (B, Ho, Wo)
    assert jnp.allclose(pc_q, q_ref, atol=1e-4, rtol=1e-4), "pc_q mismatch"
    assert jnp.allclose(pc_q_max, qmax_ref, atol=1e-4, rtol=1e-4), "pc_q_max mismatch"
    assert jnp.array_equal(pc_q_argmax, jnp.argmax(pc_q, axis=1)), "argmax mismatch"

    print("KERNEL_OK")
</pallas_src>

<mosaic_0001>
module attributes {stable_mosaic.version = 11 : i64} {
  func.func @_pixel_change_kernel(%arg0: i32, %arg1: memref<32x1024xf32, #tpu.memory_space<vmem>>, %arg2: memref<24x1024xf32, #tpu.memory_space<vmem>>, %arg3: memref<24x1xf32, #tpu.memory_space<vmem>>, %arg4: memref<16x32xf32, #tpu.memory_space<vmem>>, %arg5: memref<1x32xf32, #tpu.memory_space<vmem>>, %arg6: memref<1x32xi32, #tpu.memory_space<vmem>>) attributes {dimension_semantics = [#tpu.dimension_semantics<parallel>], iteration_bounds = array<i64: 1>, scalar_prefetch = 0 : i64, scratch_operands = 0 : i64, tpu.core_type = #tpu.core_type<tc>, window_params = [{transform_indices = @transform_0, window_bounds = array<i64: 32, 1024>}, {pipeline_mode = #tpu.pipeline_mode<synchronous>, transform_indices = @transform_1, window_bounds = array<i64: 24, 1024>}, {pipeline_mode = #tpu.pipeline_mode<synchronous>, transform_indices = @transform_2, window_bounds = array<i64: 24, 1>}, {transform_indices = @transform_3, window_bounds = array<i64: 16, 32>}, {transform_indices = @transform_4, window_bounds = array<i64: 1, 32>}, {transform_indices = @transform_5, window_bounds = array<i64: 1, 32>}]} {
    %c0 = arith.constant 0 : index
    %c0_0 = arith.constant 0 : index
    %0 = vector.load %arg2[%c0, %c0_0] : memref<24x1024xf32, #tpu.memory_space<vmem>>, vector<24x1024xf32>
    %c0_1 = arith.constant 0 : index
    %c0_2 = arith.constant 0 : index
    %1 = vector.load %arg1[%c0_1, %c0_2] : memref<32x1024xf32, #tpu.memory_space<vmem>>, vector<32x1024xf32>
    %cst = arith.constant dense<0.000000e+00> : vector<24x32xf32>
    %2 = tpu.matmul %0, %1, %cst {dimension_numbers = #tpu.dot_dimension_numbers<[1], [1], [0], [0], [0, 0, 1, 0], [], []>} : vector<24x1024xf32>, vector<32x1024xf32>, vector<24x32xf32> -> vector<24x32xf32>
    %c0_3 = arith.constant 0 : index
    %c0_4 = arith.constant 0 : index
    %3 = vector.load %arg3[%c0_3, %c0_4] : memref<24x1xf32, #tpu.memory_space<vmem>>, vector<24x1xf32>
    %4 = vector.broadcast %3 : vector<24x1xf32> to vector<24x32xf32>
    %5 = arith.addf %2, %4 : vector<24x32xf32>
    %cst_5 = arith.constant 0.000000e+00 : f32
    %6 = vector.broadcast %cst_5 : f32 to vector<24x32xf32>
    %7 = arith.maximumf %5, %6 : vector<24x32xf32>
    %8 = vector.extract_strided_slice %7 {offsets = [0, 0], sizes = [16, 32], strides = [1, 1]} : vector<24x32xf32> to vector<16x32xf32>
    %9 = vector.extract_strided_slice %7 {offsets = [16, 0], sizes = [1, 32], strides = [1, 1]} : vector<24x32xf32> to vector<1x32xf32>
    %cst_6 = arith.constant dense<0.000000e+00> : vector<32xf32>
    %10 = vector.multi_reduction <add>, %8, %cst_6 [0] : vector<16x32xf32> to vector<32xf32>
    %11 = vector.shape_cast %10 : vector<32xf32> to vector<1x32xf32>
    %cst_7 = arith.constant 1.600000e+01 : f32
    %12 = vector.broadcast %cst_7 : f32 to vector<1x32xf32>
    %13 = arith.divf %11, %12 : vector<1x32xf32>
    %14 = vector.broadcast %9 : vector<1x32xf32> to vector<16x32xf32>
    %15 = arith.addf %14, %8 : vector<16x32xf32>
    %16 = vector.broadcast %13 : vector<1x32xf32> to vector<16x32xf32>
    %17 = arith.subf %15, %16 : vector<16x32xf32>
    %c0_8 = arith.constant 0 : index
    %c0_9 = arith.constant 0 : index
    %18 = vector.load %arg4[%c0_8, %c0_9] : memref<16x32xf32, #tpu.memory_space<vmem>>, vector<16x32xf32>
    tpu.vector_store %arg4[%c0_8, %c0_9], %17 {strides = array<i32>} : memref<16x32xf32, #tpu.memory_space<vmem>>, vector<16x32xf32>,
    %cst_10 = arith.constant dense<0xFF800000> : vector<32xf32>
    %19 = vector.multi_reduction <maximumf>, %17, %cst_10 [0] : vector<16x32xf32> to vector<32xf32>
    %20 = vector.shape_cast %19 : vector<32xf32> to vector<1x32xf32>
    %c0_11 = arith.constant 0 : index
    %c0_12 = arith.constant 0 : index
    %21 = vector.load %arg5[%c0_11, %c0_12] : memref<1x32xf32, #tpu.memory_space<vmem>>, vector<1x32xf32>
    tpu.vector_store %arg5[%c0_11, %c0_12], %20 {strides = array<i32>} : memref<1x32xf32, #tpu.memory_space<vmem>>, vector<1x32xf32>,
    %22 = tpu.iota {dimensions = array<i32: 0>} : vector<16x32xi32>
    %23 = vector.broadcast %20 : vector<1x32xf32> to vector<16x32xf32>
    %24 = arith.cmpf oeq, %17, %23 : vector<16x32xf32>
    %c16_i32 = arith.constant 16 : i32
    %25 = vector.broadcast %c16_i32 : i32 to vector<16x32xi32>
    %26 = arith.select %24, %22, %25 : vector<16x32xi1>, vector<16x32xi32>
    %cst_13 = arith.constant dense<2147483647> : vector<32xi32>
    %27 = vector.multi_reduction <minsi>, %26, %cst_13 [0] : vector<16x32xi32> to vector<32xi32>
    %28 = vector.shape_cast %27 : vector<32xi32> to vector<1x32xi32>
    %c0_14 = arith.constant 0 : index
    %c0_15 = arith.constant 0 : index
    %29 = vector.load %arg6[%c0_14, %c0_15] : memref<1x32xi32, #tpu.memory_space<vmem>>, vector<1x32xi32>
    tpu.vector_store %arg6[%c0_14, %c0_15], %28 {strides = array<i32>} : memref<1x32xi32, #tpu.memory_space<vmem>>, vector<1x32xi32>,
    return
  }
  func.func @transform_0(%arg0: i32) -> (i32, i32) {
    %c0_i32 = arith.constant 0 : i32
    %c0_i32_0 = arith.constant 0 : i32
    return %arg0, %c0_i32 : i32, i32
  }
  func.func @transform_1(%arg0: i32) -> (i32, i32) {
    %c0_i32 = arith.constant 0 : i32
    %c0_i32_0 = arith.constant 0 : i32
    %c0_i32_1 = arith.constant 0 : i32
    return %c0_i32, %c0_i32_0 : i32, i32
  }
  func.func @transform_2(%arg0: i32) -> (i32, i32) {
    %c0_i32 = arith.constant 0 : i32
    %c0_i32_0 = arith.constant 0 : i32
    %c0_i32_1 = arith.constant 0 : i32
    return %c0_i32, %c0_i32_0 : i32, i32
  }
  func.func @transform_3(%arg0: i32) -> (i32, i32) {
    %c0_i32 = arith.constant 0 : i32
    %c0_i32_0 = arith.constant 0 : i32
    return %c0_i32, %arg0 : i32, i32
  }
  func.func @transform_4(%arg0: i32) -> (i32, i32) {
    %c0_i32 = arith.constant 0 : i32
    %c0_i32_0 = arith.constant 0 : i32
    return %c0_i32, %arg0 : i32, i32
  }
  func.func @transform_5(%arg0: i32) -> (i32, i32) {
    %c0_i32 = arith.constant 0 : i32
    %c0_i32_0 = arith.constant 0 : i32
    return %c0_i32, %arg0 : i32, i32
  }
}

</mosaic_0001>

<llo_original>
// kernel: tpu_custom_call.1
$region0: #{tpu_custom_call.1}
  #allocation0 [shape = 'u32[]', space=smem, size = 0x4, offset = 0x4, fixed_abs, tag = 'smem constant byte address 0x4 - core index']
  #allocation1 [shape = 'u32[144,128]{1,0:T(1,128)}', space=vmem, size = 0x12000, scoped, tag = 'internal scratch']
  %s0 = inlined_call_operand.hbm [shape: f32[32,1024], index: 0, kind: input, shape index: {}]
  %s1 = inlined_call_operand.hbm [shape: f32[24,1024], index: 1, kind: input, shape index: {}]
  %s2 = inlined_call_operand.vmem [shape: f32[24,1], index: 2, kind: input, shape index: {}]
  %s3 = inlined_call_operand.hbm [shape: f32[16,32], index: 3, kind: output, shape index: {0}]
  %s4 = inlined_call_operand.hbm [shape: f32[1,32], index: 4, kind: output, shape index: {1}]
  %s5 = inlined_call_operand.hbm [shape: s32[1,32], index: 5, kind: output, shape index: {2}]
  %6 = xla_tuple %s3, %s4, %s5
  %s7 = sld [smem:[#allocation0]]
  $region46: #{tpu_custom_call.1} parent=0
    _
  %s9 = ssub.s32 1, %s7
  %s10 = scalar_select 0, %s9, %s7
  $region1: #{tpu_custom_call.1} parent=0
    #allocation2 [shape = 'u8[131072]{0}', space=vmem, size = 0x20000, scoped, tag = 'input window, operand 0, single buffered']
    #allocation3 [shape = 's32[1]{0}', space=sflag, size = 0x4, scoped, tag = 'scoped memory for tpu_custom_call.1']
    #allocation4 [shape = 's32[1]{0}', space=sflag, size = 0x4, scoped, tag = 'scoped memory for tpu_custom_call.1']
    #allocation5 [shape = 'u8[98304]{0}', space=vmem, size = 0x18000, scoped, tag = 'input window, operand 1, single buffered']
    #allocation6 [shape = 's32[1]{0}', space=sflag, size = 0x4, scoped, tag = 'scoped memory for tpu_custom_call.1']
    #allocation7 [shape = 'u8[8192]{0}', space=vmem, size = 0x2000, scoped, tag = 'output window, operand 0, single buffered']
    #allocation8 [shape = 'u8[512]{0}', space=vmem, size = 0x400, scoped, tag = 'output window, operand 1, single buffered']
    #allocation9 [shape = 's32[1]{0}', space=sflag, size = 0x4, scoped, tag = 'scoped memory for tpu_custom_call.1']
    #allocation10 [shape = 'u8[512]{0}', space=vmem, size = 0x400, scoped, tag = 'output window, operand 2, single buffered']
    %11 = vsyncpa [#allocation3], 0
    %12 = vsyncpa [#allocation6], 0
    %13 = vsyncpa [#allocation4], 0
    %14 = vsyncpa [#allocation9], 0
    // Predicated region
    $region2: #{tpu_custom_call.1} parent=1 // pred_check
      _
    $region3: #{tpu_custom_call.1} parent=1 // pred_check_branch
      %16 = sbr.rel (0) target = $region5
    $region4: #{tpu_custom_call.1} parent=1 // pred_region
      %s18 = ssub.s32 4096, 4096
      %19 = vsyncadd [#allocation3], %s18
      %s20 = sshll.u32 [#allocation2], 4
      %s21 = int_to_ptr.vmem [resolvable:$true] %s20
      %26 = dma.hbm_to_vmem [thread:$0]  %s0, 4096, %s21, [#allocation3], 1024, 1024, 64
    $region5: #{tpu_custom_call.1} parent=1 // pred_fallthru
      _
    // Predicated region
    $region6: #{tpu_custom_call.1} parent=1 // pred_check
      _
    $region7: #{tpu_custom_call.1} parent=1 // pred_check_branch
      %28 = sbr.rel (0) target = $region9
    $region8: #{tpu_custom_call.1} parent=1 // pred_region
      %s30 = ssub.s32 3072, 3072
      %31 = vsyncadd [#allocation6], %s30
      %s32 = sshll.u32 [#allocation5], 4
      %s33 = int_to_ptr.vmem [resolvable:$true] %s32
      %38 = dma.hbm_to_vmem [thread:$0]  %s1, 3072, %s33, [#allocation6], 1024, 1024, 64
    $region9: #{tpu_custom_call.1} parent=1 // pred_fallthru
      _
    // Predicated region
    $region10: #{tpu_custom_call.1} parent=1 // pred_check
      _
    $region11: #{tpu_custom_call.1} parent=1 // pred_check_branch
      %40 = sbr.rel (0) target = $region13
    $region12: #{tpu_custom_call.1} parent=1 // pred_region
      _
    $region13: #{tpu_custom_call.1} parent=1 // pred_fallthru
      _
    // Predicated region
    $region14: #{tpu_custom_call.1} parent=1 // pred_check
      _
    $region15: #{tpu_custom_call.1} parent=1 // pred_check_branch
      %42 = sbr.rel (0) target = $region17
    $region16: #{tpu_custom_call.1} parent=1 // pred_region
      %43 = dma.done [#allocation3], 4096
    $region17: #{tpu_custom_call.1} parent=1 // pred_fallthru
      _
    // Predicated region
    $region18: #{tpu_custom_call.1} parent=1 // pred_check
      _
    $region19: #{tpu_custom_call.1} parent=1 // pred_check_branch
      %45 = sbr.rel (0) target = $region21
    $region20: #{tpu_custom_call.1} parent=1 // pred_region
      %46 = dma.done [#allocation6], 3072
    $region21: #{tpu_custom_call.1} parent=1 // pred_fallthru
      _
    %v47 = vld [vmem:[#allocation5] sm:$0xff]
    %v48 = vld [vmem:[#allocation5 + $0x8] sm:$0xff]
    %v49 = vld [vmem:[#allocation5 + $0x10] sm:$0xff]
    %v50 = vld [vmem:[#allocation5 + $0x18] sm:$0xff]
    %v51 = vld [vmem:[#allocation5 + $0x20] sm:$0xff]
    %v52 = vld [vmem:[#allocation5 + $0x28] sm:$0xff]
    %v53 = vld [vmem:[#allocation5 + $0x30] sm:$0xff]
    %v54 = vld [vmem:[#allocation5 + $0x38] sm:$0xff]
    %v55 = vld [vmem:[#allocation5 + $0x40] sm:$0xff]
    %v56 = vld [vmem:[#allocation5 + $0x48] sm:$0xff]
    %v57 = vld [vmem:[#allocation5 + $0x50] sm:$0xff]
    %v58 = vld [vmem:[#allocation5 + $0x58] sm:$0xff]
    %v59 = vld [vmem:[#allocation5 + $0x60] sm:$0xff]
    %v60 = vld [vmem:[#allocation5 + $0x68] sm:$0xff]
    %v61 = vld [vmem:[#allocation5 + $0x70] sm:$0xff]
    %v62 = vld [vmem:[#allocation5 + $0x78] sm:$0xff]
    %v63 = vld [vmem:[#allocation5 + $0x80] sm:$0xff]
    %v64 = vld [vmem:[#allocation5 + $0x88] sm:$0xff]
    %v65 = vld [vmem:[#allocation5 + $0x90] sm:$0xff]
    %v66 = vld [vmem:[#allocation5 + $0x98] sm:$0xff]
    %v67 = vld [vmem:[#allocation5 + $0xa0] sm:$0xff]
    %v68 = vld [vmem:[#allocation5 + $0xa8] sm:$0xff]
    %v69 = vld [vmem:[#allocation5 + $0xb0] sm:$0xff]
    %v70 = vld [vmem:[#allocation5 + $0xb8] sm:$0xff]
    %v71 = vld [vmem:[#allocation2] sm:$0xff]
    %v72 = vld [vmem:[#allocation2 + $0x8] sm:$0xff]
    %v73 = vld [vmem:[#allocation2 + $0x10] sm:$0xff]
    %v74 = vld [vmem:[#allocation2 + $0x18] sm:$0xff]
    %v75 = vld [vmem:[#allocation2 + $0x20] sm:$0xff]
    %v76 = vld [vmem:[#allocation2 + $0x28] sm:$0xff]
    %v77 = vld [vmem:[#allocation2 + $0x30] sm:$0xff]
    %v78 = vld [vmem:[#allocation2 + $0x38] sm:$0xff]
    %v79 = vld [vmem:[#allocation2 + $0x40] sm:$0xff]
    %v80 = vld [vmem:[#allocation2 + $0x48] sm:$0xff]
    %v81 = vld [vmem:[#allocation2 + $0x50] sm:$0xff]
    %v82 = vld [vmem:[#allocation2 + $0x58] sm:$0xff]
    %v83 = vld [vmem:[#allocation2 + $0x60] sm:$0xff]
    %v84 = vld [vmem:[#allocation2 + $0x68] sm:$0xff]
    %v85 = vld [vmem:[#allocation2 + $0x70] sm:$0xff]
    %v86 = vld [vmem:[#allocation2 + $0x78] sm:$0xff]
    %v87 = vld [vmem:[#allocation2 + $0x80] sm:$0xff]
    %v88 = vld [vmem:[#allocation2 + $0x88] sm:$0xff]
    %v89 = vld [vmem:[#allocation2 + $0x90] sm:$0xff]
    %v90 = vld [vmem:[#allocation2 + $0x98] sm:$0xff]
    %v91 = vld [vmem:[#allocation2 + $0xa0] sm:$0xff]
    %v92 = vld [vmem:[#allocation2 + $0xa8] sm:$0xff]
    %v93 = vld [vmem:[#allocation2 + $0xb0] sm:$0xff]
    %v94 = vld [vmem:[#allocation2 + $0xb8] sm:$0xff]
    %v95 = vld [vmem:[#allocation2 + $0xc0] sm:$0xff]
    %v96 = vld [vmem:[#allocation2 + $0xc8] sm:$0xff]
    %v97 = vld [vmem:[#allocation2 + $0xd0] sm:$0xff]
    %v98 = vld [vmem:[#allocation2 + $0xd8] sm:$0xff]
    %v99 = vld [vmem:[#allocation2 + $0xe0] sm:$0xff]
    %v100 = vld [vmem:[#allocation2 + $0xe8] sm:$0xff]
    %v101 = vld [vmem:[#allocation2 + $0xf0] sm:$0xff]
    %v102 = vld [vmem:[#allocation2 + $0xf8] sm:$0xff]
    %v103 = vld [vmem:[%s2] sm:$0xff]
    %v104 = vld [vmem:[%s2 + $0x8] sm:$0xff]
    %v105 = vld [vmem:[%s2 + $0x10] sm:$0xff]
    %107 = vset.pattern.permute.xlu0 0
    %108 = vperm.xlu0 %107, %v103
    %v109 = vpop.permute.xlu0 %108
    %112 = vset.pattern.permute.xlu0 0
    %113 = vperm.xlu0 %112, %v104
    %v114 = vpop.permute.xlu0 %113
    %117 = vset.pattern.permute.xlu0 0
    %118 = vperm.xlu0 %117, %v105
    %v119 = vpop.permute.xlu0 %118
    %121 = vmatprep.subr.mxu0 0.0
    %122 = vmatpush1.xpose.msra.mxu0 0.0
    %123 = vmatprep.subr.mxu0 0.0
    %124 = vmatpush1.xpose.msra.mxu0 0.0
    %125 = vmatprep.subr.mxu0 0.0
    %126 = vmatpush1.xpose.msra.mxu0 0.0
    %127 = vmatprep.subr.mxu0 0.0
    %128 = vmatpush1.xpose.msra.mxu0 0.0
    %129 = vmatprep.subr.mxu0 0.0
    %130 = vmatpush1.xpose.msra.mxu0 0.0
    %131 = vmatprep.subr.mxu0 0.0
    %132 = vmatpush1.xpose.msra.mxu0 0.0
    %133 = vmatprep.subr.mxu0 0.0
    %134 = vmatpush1.xpose.msra.mxu0 0.0
    %135 = vmatprep.subr.mxu0 0.0
    %136 = vmatpush1.xpose.msra.mxu0 0.0
    %137 = vmatprep.subr.mxu0 0.0
    %138 = vmatpush1.xpose.msra.mxu0 0.0
    %139 = vmatprep.subr.mxu0 0.0
    %140 = vmatpush1.xpose.msra.mxu0 0.0
    %141 = vmatprep.subr.mxu0 0.0
    %142 = vmatpush1.xpose.msra.mxu0 0.0
    %143 = vmatprep.subr.mxu0 0.0
    %144 = vmatpush1.xpose.msra.mxu0 0.0
    %145 = vmatprep.subr.mxu0 %v96
    %146 = vmatpush1.xpose.msra.mxu0 %v95
    %147 = vmatprep.subr.mxu0 %v88
    %148 = vmatpush1.xpose.msra.mxu0 %v87
    %149 = vmatprep.subr.mxu0 %v80
    %150 = vmatpush1.xpose.msra.mxu0 %v79
    %151 = vmatprep.subr.mxu0 %v72
    %152 = vmatpush1.xpose.msra.mxu0 %v71
    %153 = vmatprep.subr.mxu0 0.0
    %154 = vmatpush2.xpose.msra.mxu0 0.0
    %155 = vmatprep.subr.mxu0 0.0
    %156 = vmatpush2.xpose.msra.mxu0 0.0
    %157 = vmatprep.subr.mxu0 0.0
    %158 = vmatpush2.xpose.msra.mxu0 0.0
    %159 = vmatprep.subr.mxu0 0.0
    %160 = vmatpush2.xpose.msra.mxu0 0.0
    %161 = vmatprep.subr.mxu0 0.0
    %162 = vmatpush2.xpose.msra.mxu0 0.0
    %163 = vmatprep.subr.mxu0 0.0
    %164 = vmatpush2.xpose.msra.mxu0 0.0
    %165 = vmatprep.subr.mxu0 0.0
    %166 = vmatpush2.xpose.msra.mxu0 0.0
    %167 = vmatprep.subr.mxu0 0.0
    %168 = vmatpush2.xpose.msra.mxu0 0.0
    %169 = vmatprep.subr.mxu0 0.0
    %170 = vmatpush2.xpose.msra.mxu0 0.0
    %171 = vmatprep.subr.mxu0 0.0
    %172 = vmatpush2.xpose.msra.mxu0 0.0
    %173 = vmatprep.subr.mxu0 0.0
    %174 = vmatpush2.xpose.msra.mxu0 0.0
    %175 = vmatprep.subr.mxu0 0.0
    %176 = vmatpush2.xpose.msra.mxu0 0.0
    %177 = vmatprep.subr.mxu0 0.0
    %178 = vmatpush2.xpose.msra.mxu0 0.0
    %179 = vmatprep.subr.mxu0 0.0
    %180 = vmatpush2.xpose.msra.mxu0 0.0
    %181 = vmatprep.subr.mxu0 0.0
    %182 = vmatpush2.xpose.msra.mxu0 0.0
    %183 = vmatprep.subr.mxu0 0.0
    %184 = vmatpush2.xpose.msra.mxu0 0.0
    %185 = vmatprep.mubr.f32.mxu0 %v48
    %186 = vmatmul.mubr.f32.gmra.mxu0 %v47
    %v187 = vpop.f32.mrf.mxu0
    %v188 = vadd.f32 %v109, %v187
    %v189 = vpop.f32.mrf.mxu0
    %190 = vmatprep.mubr.f32.mxu0 %v56
    %191 = vmatmul.mubr.f32.gmra.mxu0 %v55
    %v192 = vpop.f32.mrf.mxu0
    %v193 = vadd.f32 %v114, %v192
    %v194 = vpop.f32.mrf.mxu0
    %195 = vmatprep.mubr.f32.mxu0 %v64
    %196 = vmatmul.mubr.f32.gmra.mxu0 %v63
    %v197 = vpop.f32.mrf.mxu0
    %v198 = vadd.f32 %v119, %v197
    %v199 = vpop.f32.mrf.mxu0
    %200 = vdwg.mxu0
    %201 = vmatprep.subr.mxu0 0.0
    %202 = vmatpush1.xpose.msra.mxu0 0.0
    %203 = vmatprep.subr.mxu0 0.0
    %204 = vmatpush1.xpose.msra.mxu0 0.0
    %205 = vmatprep.subr.mxu0 0.0
    %206 = vmatpush1.xpose.msra.mxu0 0.0
    %207 = vmatprep.subr.mxu0 0.0
    %208 = vmatpush1.xpose.msra.mxu0 0.0
    %209 = vmatprep.subr.mxu0 0.0
    %210 = vmatpush1.xpose.msra.mxu0 0.0
    %211 = vmatprep.subr.mxu0 0.0
    %212 = vmatpush1.xpose.msra.mxu0 0.0
    %213 = vmatprep.subr.mxu0 0.0
    %214 = vmatpush1.xpose.msra.mxu0 0.0
    %215 = vmatprep.subr.mxu0 0.0
    %216 = vmatpush1.xpose.msra.mxu0 0.0
    %217 = vmatprep.subr.mxu0 0.0
    %218 = vmatpush1.xpose.msra.mxu0 0.0
    %219 = vmatprep.subr.mxu0 0.0
    %220 = vmatpush1.xpose.msra.mxu0 0.0
    %221 = vmatprep.subr.mxu0 0.0
    %222 = vmatpush1.xpose.msra.mxu0 0.0
    %223 = vmatprep.subr.mxu0 0.0
    %224 = vmatpush1.xpose.msra.mxu0 0.0
    %225 = vmatprep.subr.mxu0 %v98
    %226 = vmatpush1.xpose.msra.mxu0 %v97
    %227 = vmatprep.subr.mxu0 %v90
    %228 = vmatpush1.xpose.msra.mxu0 %v89
    %229 = vmatprep.subr.mxu0 %v82
    %230 = vmatpush1.xpose.msra.mxu0 %v81
    %231 = vmatprep.subr.mxu0 %v74
    %232 = vmatpush1.xpose.msra.mxu0 %v73
    %233 = vmatprep.subr.mxu0 0.0
    %234 = vmatpush2.xpose.msra.mxu0 0.0
    %235 = vmatprep.subr.mxu0 0.0
    %236 = vmatpush2.xpose.msra.mxu0 0.0
    %237 = vmatprep.subr.mxu0 0.0
    %238 = vmatpush2.xpose.msra.mxu0 0.0
    %239 = vmatprep.subr.mxu0 0.0
    %240 = vmatpush2.xpose.msra.mxu0 0.0
    %241 = vmatprep.subr.mxu0 0.0
    %242 = vmatpush2.xpose.msra.mxu0 0.0
    %243 = vmatprep.subr.mxu0 0.0
    %244 = vmatpush2.xpose.msra.mxu0 0.0
    %245 = vmatprep.subr.mxu0 0.0
    %246 = vmatpush2.xpose.msra.mxu0 0.0
    %247 = vmatprep.subr.mxu0 0.0
    %248 = vmatpush2.xpose.msra.mxu0 0.0
    %249 = vmatprep.subr.mxu0 0.0
    %250 = vmatpush2.xpose.msra.mxu0 0.0
    %251 = vmatprep.subr.mxu0 0.0
    %252 = vmatpush2.xpose.msra.mxu0 0.0
    %253 = vmatprep.subr.mxu0 0.0
    %254 = vmatpush2.xpose.msra.mxu0 0.0
    %255 = vmatprep.subr.mxu0 0.0
    %256 = vmatpush2.xpose.msra.mxu0 0.0
    %257 = vmatprep.subr.mxu0 0.0
    %258 = vmatpush2.xpose.msra.mxu0 0.0
    %259 = vmatprep.subr.mxu0 0.0
    %260 = vmatpush2.xpose.msra.mxu0 0.0
    %261 = vmatprep.subr.mxu0 0.0
    %262 = vmatpush2.xpose.msra.mxu0 0.0
    %263 = vmatprep.subr.mxu0 0.0
    %264 = vmatpush2.xpose.msra.mxu0 0.0
    %265 = vmatprep.mubr.f32.mxu0 %v50
    %266 = vmatmul.mubr.f32.gmra.mxu0 %v49
    %v267 = vpop.f32.mrf.mxu0
    %v268 = vadd.f32 %v188, %v267
    %v269 = vpop.f32.mrf.mxu0
    %270 = vmatprep.mubr.f32.mxu0 %v58
    %271 = vmatmul.mubr.f32.gmra.mxu0 %v57
    %v272 = vpop.f32.mrf.mxu0
    %v273 = vadd.f32 %v193, %v272
    %v274 = vpop.f32.mrf.mxu0
    %275 = vmatprep.mubr.f32.mxu0 %v66
    %276 = vmatmul.mubr.f32.gmra.mxu0 %v65
    %v277 = vpop.f32.mrf.mxu0
    %v278 = vadd.f32 %v198, %v277
    %v279 = vpop.f32.mrf.mxu0
    %280 = vdwg.mxu0
    %281 = vmatprep.subr.mxu0 0.0
    %282 = vmatpush1.xpose.msra.mxu0 0.0
    %283 = vmatprep.subr.mxu0 0.0
    %284 = vmatpush1.xpose.msra.mxu0 0.0
    %285 = vmatprep.subr.mxu0 0.0
    %286 = vmatpush1.xpose.msra.mxu0 0.0
    %287 = vmatprep.subr.mxu0 0.0
    %288 = vmatpush1.xpose.msra.mxu0 0.0
    %289 = vmatprep.subr.mxu0 0.0
    %290 = vmatpush1.xpose.msra.mxu0 0.0
    %291 = vmatprep.subr.mxu0 0.0
    %292 = vmatpush1.xpose.msra.mxu0 0.0
    %293 = vmatprep.subr.mxu0 0.0
    %294 = vmatpush1.xpose.msra.mxu0 0.0
    %295 = vmatprep.subr.mxu0 0.0
    %296 = vmatpush1.xpose.msra.mxu0 0.0
    %297 = vmatprep.subr.mxu0 0.0
    %298 = vmatpush1.xpose.msra.mxu0 0.0
    %299 = vmatprep.subr.mxu0 0.0
    %300 = vmatpush1.xpose.msra.mxu0 0.0
    %301 = vmatprep.subr.mxu0 0.0
    %302 = vmatpush1.xpose.msra.mxu0 0.0
    %303 = vmatprep.subr.mxu0 0.0
    %304 = vmatpush1.xpose.msra.mxu0 0.0
    %305 = vmatprep.subr.mxu0 %v100
    %306 = vmatpush1.xpose.msra.mxu0 %v99
    %307 = vmatprep.subr.mxu0 %v92
    %308 = vmatpush1.xpose.msra.mxu0 %v91
    %309 = vmatprep.subr.mxu0 %v84
    %310 = vmatpush1.xpose.msra.mxu0 %v83
    %311 = vmatprep.subr.mxu0 %v76
    %312 = vmatpush1.xpose.msra.mxu0 %v75
    %313 = vmatprep.subr.mxu0 0.0
    %314 = vmatpush2.xpose.msra.mxu0 0.0
    %315 = vmatprep.subr.mxu0 0.0
    %316 = vmatpush2.xpose.msra.mxu0 0.0
    %317 = vmatprep.subr.mxu0 0.0
    %318 = vmatpush2.xpose.msra.mxu0 0.0
    %319 = vmatprep.subr.mxu0 0.0
    %320 = vmatpush2.xpose.msra.mxu0 0.0
    %321 = vmatprep.subr.mxu0 0.0
    %322 = vmatpush2.xpose.msra.mxu0 0.0
    %323 = vmatprep.subr.mxu0 0.0
    %324 = vmatpush2.xpose.msra.mxu0 0.0
    %325 = vmatprep.subr.mxu0 0.0
    %326 = vmatpush2.xpose.msra.mxu0 0.0
    %327 = vmatprep.subr.mxu0 0.0
    %328 = vmatpush2.xpose.msra.mxu0 0.0
    %329 = vmatprep.subr.mxu0 0.0
    %330 = vmatpush2.xpose.msra.mxu0 0.0
    %331 = vmatprep.subr.mxu0 0.0
    %332 = vmatpush2.xpose.msra.mxu0 0.0
    %333 = vmatprep.subr.mxu0 0.0
    %334 = vmatpush2.xpose.msra.mxu0 0.0
    %335 = vmatprep.subr.mxu0 0.0
    %336 = vmatpush2.xpose.msra.mxu0 0.0
    %337 = vmatprep.subr.mxu0 0.0
    %338 = vmatpush2.xpose.msra.mxu0 0.0
    %339 = vmatprep.subr.mxu0 0.0
    %340 = vmatpush2.xpose.msra.mxu0 0.0
    %341 = vmatprep.subr.mxu0 0.0
    %342 = vmatpush2.xpose.msra.mxu0 0.0
    %343 = vmatprep.subr.mxu0 0.0
    %344 = vmatpush2.xpose.msra.mxu0 0.0
    %345 = vmatprep.mubr.f32.mxu0 %v52
    %346 = vmatmul.mubr.f32.gmra.mxu0 %v51
    %v347 = vpop.f32.mrf.mxu0
    %v348 = vadd.f32 %v268, %v347
    %v349 = vpop.f32.mrf.mxu0
    %350 = vmatprep.mubr.f32.mxu0 %v60
    %351 = vmatmul.mubr.f32.gmra.mxu0 %v59
    %v352 = vpop.f32.mrf.mxu0
    %v353 = vadd.f32 %v273, %v352
    %v354 = vpop.f32.mrf.mxu0
    %355 = vmatprep.mubr.f32.mxu0 %v68
    %356 = vmatmul.mubr.f32.gmra.mxu0 %v67
    %v357 = vpop.f32.mrf.mxu0
    %v358 = vadd.f32 %v278, %v357
    %v359 = vpop.f32.mrf.mxu0
    %360 = vdwg.mxu0
    %361 = vmatprep.subr.mxu0 0.0
    %362 = vmatpush1.xpose.msra.mxu0 0.0
    %363 = vmatprep.subr.mxu0 0.0
    %364 = vmatpush1.xpose.msra.mxu0 0.0
    %365 = vmatprep.subr.mxu0 0.0
    %366 = vmatpush1.xpose.msra.mxu0 0.0
    %367 = vmatprep.subr.mxu0 0.0
    %368 = vmatpush1.xpose.msra.mxu0 0.0
    %369 = vmatprep.subr.mxu0 0.0
    %370 = vmatpush1.xpose.msra.mxu0 0.0
    %371 = vmatprep.subr.mxu0 0.0
    %372 = vmatpush1.xpose.msra.mxu0 0.0
    %373 = vmatprep.subr.mxu0 0.0
    %374 = vmatpush1.xpose.msra.mxu0 0.0
    %375 = vmatprep.subr.mxu0 0.0
    %376 = vmatpush1.xpose.msra.mxu0 0.0
    %377 = vmatprep.subr.mxu0 0.0
    %378 = vmatpush1.xpose.msra.mxu0 0.0
    %379 = vmatprep.subr.mxu0 0.0
    %380 = vmatpush1.xpose.msra.mxu0 0.0
    %381 = vmatprep.subr.mxu0 0.0
    %382 = vmatpush1.xpose.msra.mxu0 0.0
    %383 = vmatprep.subr.mxu0 0.0
    %384 = vmatpush1.xpose.msra.mxu0 0.0
    %385 = vmatprep.subr.mxu0 %v102
    %386 = vmatpush1.xpose.msra.mxu0 %v101
    %387 = vmatprep.subr.mxu0 %v94
    %388 = vmatpush1.xpose.msra.mxu0 %v93
    %389 = vmatprep.subr.mxu0 %v86
    %390 = vmatpush1.xpose.msra.mxu0 %v85
    %391 = vmatprep.subr.mxu0 %v78
    %392 = vmatpush1.xpose.msra.mxu0 %v77
    %393 = vmatprep.subr.mxu0 0.0
    %394 = vmatpush2.xpose.msra.mxu0 0.0
    %395 = vmatprep.subr.mxu0 0.0
    %396 = vmatpush2.xpose.msra.mxu0 0.0
    %397 = vmatprep.subr.mxu0 0.0
    %398 = vmatpush2.xpose.msra.mxu0 0.0
    %399 = vmatprep.subr.mxu0 0.0
    %400 = vmatpush2.xpose.msra.mxu0 0.0
    %401 = vmatprep.subr.mxu0 0.0
    %402 = vmatpush2.xpose.msra.mxu0 0.0
    %403 = vmatprep.subr.mxu0 0.0
    %404 = vmatpush2.xpose.msra.mxu0 0.0
    %405 = vmatprep.subr.mxu0 0.0
    %406 = vmatpush2.xpose.msra.mxu0 0.0
    %407 = vmatprep.subr.mxu0 0.0
    %408 = vmatpush2.xpose.msra.mxu0 0.0
    %409 = vmatprep.subr.mxu0 0.0
    %410 = vmatpush2.xpose.msra.mxu0 0.0
    %411 = vmatprep.subr.mxu0 0.0
    %412 = vmatpush2.xpose.msra.mxu0 0.0
    %413 = vmatprep.subr.mxu0 0.0
    %414 = vmatpush2.xpose.msra.mxu0 0.0
    %415 = vmatprep.subr.mxu0 0.0
    %416 = vmatpush2.xpose.msra.mxu0 0.0
    %417 = vmatprep.subr.mxu0 0.0
    %418 = vmatpush2.xpose.msra.mxu0 0.0
    %419 = vmatprep.subr.mxu0 0.0
    %420 = vmatpush2.xpose.msra.mxu0 0.0
    %421 = vmatprep.subr.mxu0 0.0
    %422 = vmatpush2.xpose.msra.mxu0 0.0
    %423 = vmatprep.subr.mxu0 0.0
    %424 = vmatpush2.xpose.msra.mxu0 0.0
    %425 = vmatprep.mubr.f32.mxu0 %v54
    %426 = vmatmul.mubr.f32.gmra.mxu0 %v53
    %v427 = vpop.f32.mrf.mxu0
    %v428 = vadd.f32 %v348, %v427
    %v429 = vpop.f32.mrf.mxu0
    %430 = vmatprep.mubr.f32.mxu0 %v62
    %431 = vmatmul.mubr.f32.gmra.mxu0 %v61
    %v432 = vpop.f32.mrf.mxu0
    %v433 = vadd.f32 %v353, %v432
    %v434 = vpop.f32.mrf.mxu0
    %435 = vmatprep.mubr.f32.mxu0 %v70
    %436 = vmatmul.mubr.f32.gmra.mxu0 %v69
    %v437 = vpop.f32.mrf.mxu0
    %v438 = vadd.f32 %v358, %v437
    %v439 = vpop.f32.mrf.mxu0
    %440 = vdwg.mxu0
    %v441 = vmax.f32 %v428, 0.0
    %v442 = vmax.f32 %v433, 0.0
    %v443 = vmax.f32 %v438, 0.0
    %vm444 = vcmask 261120
    %v445 = vsel %vm444, %v441, 0.0
    %v446 = vsel %vm444, %v442, 0.0
    %v447 = vadd.f32 %v445, %v446
    %v448 = vrot.slane %v447, 4
    %v449 = vadd.f32 %v447, %v448
    %v450 = vrot.slane %v449, 2
    %v451 = vadd.f32 %v449, %v450
    %v452 = vrot.slane %v451, 1
    %v453 = vadd.f32 %v451, %v452
    %v454 = vrcp.pop 16.0
    %v455 = vmul.f32 %v453, %v454
    %v456 = vlaneseq
    %v457 = vshrl.u32 %v456, 7
    %v458 = vsub.s32 0, %v457
    %v459 = vrot.slane %v443, %v458
    %v460 = vadd.f32 %v459, %v441
    %v461 = vadd.f32 %v459, %v442
    %v462 = vsub.f32 %v460, %v455
    %v463 = vsub.f32 %v461, %v455
    %464 = vst.msk [vmem:[#allocation7] sm:$0xff] %vm444, %v462
    %465 = vst.msk [vmem:[#allocation7 + $0x8] sm:$0xff] %vm444, %v463
    %v466 = vsel %vm444, %v462, -inf
    %v467 = vsel %vm444, %v463, -inf
    %v468 = vmax.f32 %v466, %v467
    %v469 = vrot.slane %v468, 4
    %v470 = vmax.f32 %v468, %v469
    %v471 = vrot.slane %v470, 2
    %v472 = vmax.f32 %v470, %v471
    %v473 = vrot.slane %v472, 1
    %v474 = vmax.f32 %v472, %v473
    %vm475 = vcmask 253952
    %476 = vst.msk [vmem:[#allocation8] sm:$0x1] %vm475, %v474
    %v477 = vlaneseq
    %v478 = vshrl.u32 %v477, 7
    %v479 = vadd.s32 %v478, 8
    %vm480 = vcmp.eq.f32.partialorder %v462, %v474
    %vm481 = vcmp.eq.f32.partialorder %v463, %v474
    %v482 = vsel %vm480, %v478, 16
    %v483 = vsel %vm481, %v479, 16
    %v484 = vsel %vm444, %v482, 2147483647
    %v485 = vsel %vm444, %v483, 2147483647
    %vm486 = vcmp.lt.s32.totalorder %v484, %v485
    %v487 = vsel %vm486, %v484, %v485
    %v488 = vrot.slane %v487, 4
    %vm489 = vcmp.lt.s32.totalorder %v487, %v488
    %v490 = vsel %vm489, %v487, %v488
    %v491 = vrot.slane %v490, 2
    %vm492 = vcmp.lt.s32.totalorder %v490, %v491
    %v493 = vsel %vm492, %v490, %v491
    %v494 = vrot.slane %v493, 1
    %vm495 = vcmp.lt.s32.totalorder %v493, %v494
    %v496 = vsel %vm495, %v493, %v494
    %497 = vst.msk [vmem:[#allocation10] sm:$0x1] %vm475, %v496
    // Predicated region
    $region22: #{tpu_custom_call.1} parent=1 // pred_check
      _
    $region23: #{tpu_custom_call.1} parent=1 // pred_check_branch
      %499 = sbr.rel (0) target = $region25
    $region24: #{tpu_custom_call.1} parent=1 // pred_region
      %s501 = ssub.s32 256, 256
      %502 = vsyncadd [#allocation4], %s501
      %s503 = sshll.u32 [#allocation7], 4
      %s504 = int_to_ptr.vmem [resolvable:$true] %s503
      %509 = dma.vmem_to_hbm [thread:$0]  %s504, 256, %s3, [#allocation4], 128, 128, 8
    $region25: #{tpu_custom_call.1} parent=1 // pred_fallthru
      _
    // Predicated region
    $region26: #{tpu_custom_call.1} parent=1 // pred_check
      _
    $region27: #{tpu_custom_call.1} parent=1 // pred_check_branch
      %511 = sbr.rel (0) target = $region29
    $region28: #{tpu_custom_call.1} parent=1 // pred_region
      %s513 = ssub.s32 16, 16
      %514 = vsyncadd [#allocation9], %s513
      %s516 = sshll.u32 [#allocation8], 4
      %s517 = int_to_ptr.vmem [resolvable:$true] %s516
      %519 = dma.vmem_to_hbm [thread:$0]  %s517, 16, %s4, [#allocation9]
    $region29: #{tpu_custom_call.1} parent=1 // pred_fallthru
      _
    // Predicated region
    $region30: #{tpu_custom_call.1} parent=1 // pred_check
      _
    $region31: #{tpu_custom_call.1} parent=1 // pred_check_branch
      %521 = sbr.rel (0) target = $region33
    $region32: #{tpu_custom_call.1} parent=1 // pred_region
      %s523 = ssub.s32 16, 16
      %524 = vsyncadd [#allocation9], %s523
      %s526 = sshll.u32 [#allocation10], 4
      %s527 = int_to_ptr.vmem [resolvable:$true] %s526
      %529 = dma.vmem_to_hbm [thread:$0]  %s527, 16, %s5, [#allocation9]
    $region33: #{tpu_custom_call.1} parent=1 // pred_fallthru
      _
    // Predicated region
    $region34: #{tpu_custom_call.1} parent=1 // pred_check
      _
    $region35: #{tpu_custom_call.1} parent=1 // pred_check_branch
      %531 = sbr.rel (0) target = $region37
    $region36: #{tpu_custom_call.1} parent=1 // pred_region
      %532 = dma.done [#allocation4], 256
    $region37: #{tpu_custom_call.1} parent=1 // pred_fallthru
      _
    // Predicated region
    $region38: #{tpu_custom_call.1} parent=1 // pred_check
      _
    $region39: #{tpu_custom_call.1} parent=1 // pred_check_branch
      %534 = sbr.rel (0) target = $region41
    $region40: #{tpu_custom_call.1} parent=1 // pred_region
      %535 = dma.done [#allocation9], 16
    $region41: #{tpu_custom_call.1} parent=1 // pred_fallthru
      _
    // Predicated region
    $region42: #{tpu_custom_call.1} parent=1 // pred_check
      _
    $region43: #{tpu_custom_call.1} parent=1 // pred_check_branch
      %537 = sbr.rel (0) target = $region45
    $region44: #{tpu_custom_call.1} parent=1 // pred_region
      %538 = dma.done [#allocation9], 16
    $region45: #{tpu_custom_call.1} parent=1 // pred_fallthru
      _
    %539 = vsyncpa [#allocation3], 1
    %540 = vsyncpa [#allocation6], 1
    %541 = vsyncpa [#allocation4], 1
    %542 = vsyncpa [#allocation9], 1

</llo_original>
